<compile_context>
chip_gen: v7x
topology: tpu7x:2x2x1
jax: 0.10.0
libtpu: 0.0.40
codegen_flags: <defaults>
</compile_context>

<pallas_src>
import functools

import jax
import jax.numpy as jnp
from jax.experimental import pallas as pl
from jax.experimental.pallas import tpu as pltpu


def _periodic_pad_kernel(x_ref, o_ref, *, p, H, W):
    # x_ref: (T, H, W), o_ref: (T, H + 2p, W + 2p).  Circular (wrap) pad.
    x = x_ref[...]
    top = x[:, H - p:, :]   # last p input rows -> top halo rows
    bot = x[:, :p, :]       # first p input rows -> bottom halo rows

    # Interior rows: interior + left/right wrapped columns.
    o_ref[:, p:p + H, p:p + W] = x
    o_ref[:, p:p + H, :p] = x[:, :, W - p:]
    o_ref[:, p:p + H, p + W:] = x[:, :, :p]

    # Top halo rows (including corners).
    o_ref[:, :p, p:p + W] = top
    o_ref[:, :p, :p] = top[:, :, W - p:]
    o_ref[:, :p, p + W:] = top[:, :, :p]

    # Bottom halo rows (including corners).
    o_ref[:, p + H:, p:p + W] = bot
    o_ref[:, p + H:, :p] = bot[:, :, W - p:]
    o_ref[:, p + H:, p + W:] = bot[:, :, :p]


def _zero_pad_kernel(x_ref, o_ref, *, p, H, W):
    # x_ref: (T, H, W), o_ref: (T, H + 2p, W + 2p).  Constant-zero pad.
    x = x_ref[...]
    T = x.shape[0]
    zrow = jnp.zeros((T, p, W + 2 * p), x.dtype)
    zcol = jnp.zeros((T, H, p), x.dtype)
    # Halos only (interior is NOT double-written).
    o_ref[:, :p, :] = zrow
    o_ref[:, p + H:, :] = zrow
    o_ref[:, p:p + H, :p] = zcol
    o_ref[:, p:p + H, p + W:] = zcol
    # Interior written exactly once.
    o_ref[:, p:p + H, p:p + W] = x


def _choose_plane_tile(num_planes, H, W, Hp, Wp, itemsize):
    """Pick T planes per grid step so the (in + out) block is ~1 MiB."""
    plane_bytes = (H * W + Hp * Wp) * itemsize
    target = 1 << 20  # ~1 MiB per step: measured ~85%+ of HBM roofline
    t = max(1, min(num_planes, target // max(plane_bytes, 1)))
    # Shrink to a divisor of num_planes so the grid tiles exactly.
    while num_planes % t != 0:
        t -= 1
    return t


def _run_pad(x, p, kernel_fn):
    N, C, H, W = x.shape
    Hp, Wp = H + 2 * p, W + 2 * p
    NC = N * C
    xf = x.reshape(NC, H, W)  # free reshape (no HBM data movement)

    T = _choose_plane_tile(NC, H, W, Hp, Wp, x.dtype.itemsize)
    block_bytes = T * (H * W + Hp * Wp) * x.dtype.itemsize
    # Double-buffered in+out blocks plus headroom; also raises v5e's 16 MiB
    # default scoped-VMEM limit.  Capped well under v7x's 64 MiB physical VMEM.
    vmem_limit = int(min(48 * 2**20, max(32 * 2**20, 4 * block_bytes)))

    # TODO(synk): for very large single planes (e.g. f32 2048x2048) add a
    # row-tiling grid axis so double-buffered blocks fit v7x's 64 MiB VMEM.
    # TODO(synk): for tiny W (<128) a lane-dense repack (planes on the lane
    # axis) would remove masked stores, but the required HBM transpose costs
    # more than it saves for this pure-bandwidth op, so it is skipped here.
    kernel = functools.partial(kernel_fn, p=p, H=H, W=W)
    out = pl.pallas_call(
        kernel,
        out_shape=jax.ShapeDtypeStruct((NC, Hp, Wp), x.dtype),
        grid_spec=pltpu.PrefetchScalarGridSpec(
            num_scalar_prefetch=0,
            grid=(NC // T,),
            in_specs=[pl.BlockSpec((T, H, W), lambda i: (i, 0, 0))],
            out_specs=pl.BlockSpec((T, Hp, Wp), lambda i: (i, 0, 0)),
        ),
        compiler_params=pltpu.CompilerParams(
            dimension_semantics=("parallel",),
            vmem_limit_bytes=vmem_limit),
    )(xf)
    return out.reshape(N, C, Hp, Wp)


def periodic_padding(x, kSize, mode='zero'):
    """Mirrors PeriodicPadding.forward for NCHW input `x`."""
    N, C, H, W = x.shape
    if mode == 'periodic':
        if kSize == 1:
            return x
        if kSize % 2 != 0:
            p = (kSize - 1) // 2
            return _run_pad(x, p, _periodic_pad_kernel)
        elif H % 2 == 0 and W % 2 == 0:
            return x
        # TODO(synk): PyTorch forward implicitly returns None on this branch
        # (even kSize, odd spatial dims); mirror that behavior.
        return None
    elif mode == 'zero':
        if kSize == 1 or kSize == 2:
            return x
        p = (kSize - 1) // 2
        return _run_pad(x, p, _zero_pad_kernel)
    # TODO(synk): unknown mode implicitly returns None in PyTorch; mirrored.
    return None


if __name__ == "__main__":
    key = jax.random.PRNGKey(0)
    x = jax.random.normal(key, (2, 4, 16, 16), dtype=jnp.float32)
    kSize = 3
    p = (kSize - 1) // 2

    # periodic (circular) padding
    y_per = periodic_padding(x, kSize, mode='periodic')
    y_per = jax.block_until_ready(y_per)
    ref_per = jnp.pad(x, ((0, 0), (0, 0), (p, p), (p, p)), mode='wrap')
    assert y_per.shape == ref_per.shape and y_per.dtype == ref_per.dtype
    assert bool(jnp.allclose(y_per, ref_per))

    # zero (constant) padding
    y_zero = periodic_padding(x, kSize, mode='zero')
    y_zero = jax.block_until_ready(y_zero)
    ref_zero = jnp.pad(x, ((0, 0), (0, 0), (p, p), (p, p)), mode='constant')
    assert y_zero.shape == ref_zero.shape and y_zero.dtype == ref_zero.dtype
    assert bool(jnp.allclose(y_zero, ref_zero))

    # larger kSize exercises p > 1 slice stores
    y5 = periodic_padding(x, 5, mode='periodic')
    y5 = jax.block_until_ready(y5)
    ref5 = jnp.pad(x, ((0, 0), (0, 0), (2, 2), (2, 2)), mode='wrap')
    assert bool(jnp.allclose(y5, ref5))

    # identity branches
    assert periodic_padding(x, 1, mode='periodic') is x
    assert periodic_padding(x, 2, mode='zero') is x

    print("KERNEL_OK")
</pallas_src>

<mosaic_0001>
module attributes {stable_mosaic.version = 11 : i64} {
  func.func @_periodic_pad_kernel(%arg0: i32, %arg1: memref<8x16x16xf32, #tpu.memory_space<vmem>>, %arg2: memref<8x18x18xf32, #tpu.memory_space<vmem>>) attributes {dimension_semantics = [#tpu.dimension_semantics<parallel>], iteration_bounds = array<i64: 1>, scalar_prefetch = 0 : i64, scratch_operands = 0 : i64, tpu.core_type = #tpu.core_type<tc>, window_params = [{transform_indices = @transform_0, window_bounds = array<i64: 8, 16, 16>}, {transform_indices = @transform_1, window_bounds = array<i64: 8, 18, 18>}]} {
    %c0 = arith.constant 0 : index
    %c0_0 = arith.constant 0 : index
    %c0_1 = arith.constant 0 : index
    %0 = vector.load %arg1[%c0, %c0_0, %c0_1] : memref<8x16x16xf32, #tpu.memory_space<vmem>>, vector<8x16x16xf32>
    %1 = vector.extract_strided_slice %0 {offsets = [0, 15, 0], sizes = [8, 1, 16], strides = [1, 1, 1]} : vector<8x16x16xf32> to vector<8x1x16xf32>
    %2 = vector.extract_strided_slice %0 {offsets = [0, 0, 0], sizes = [8, 1, 16], strides = [1, 1, 1]} : vector<8x16x16xf32> to vector<8x1x16xf32>
    %c0_2 = arith.constant 0 : index
    %c1 = arith.constant 1 : index
    %c1_3 = arith.constant 1 : index
    %3 = vector.load %arg2[%c0_2, %c1, %c1_3] : memref<8x18x18xf32, #tpu.memory_space<vmem>>, vector<8x16x16xf32>
    tpu.vector_store %arg2[%c0_2, %c1, %c1_3], %0 {strides = array<i32>} : memref<8x18x18xf32, #tpu.memory_space<vmem>>, vector<8x16x16xf32>,
    %4 = vector.extract_strided_slice %0 {offsets = [0, 0, 15], sizes = [8, 16, 1], strides = [1, 1, 1]} : vector<8x16x16xf32> to vector<8x16x1xf32>
    %c0_4 = arith.constant 0 : index
    %c1_5 = arith.constant 1 : index
    %c0_6 = arith.constant 0 : index
    %5 = vector.load %arg2[%c0_4, %c1_5, %c0_6] : memref<8x18x18xf32, #tpu.memory_space<vmem>>, vector<8x16x1xf32>
    tpu.vector_store %arg2[%c0_4, %c1_5, %c0_6], %4 {strides = array<i32>} : memref<8x18x18xf32, #tpu.memory_space<vmem>>, vector<8x16x1xf32>,
    %6 = vector.extract_strided_slice %0 {offsets = [0, 0, 0], sizes = [8, 16, 1], strides = [1, 1, 1]} : vector<8x16x16xf32> to vector<8x16x1xf32>
    %c0_7 = arith.constant 0 : index
    %c1_8 = arith.constant 1 : index
    %c17 = arith.constant 17 : index
    %7 = vector.load %arg2[%c0_7, %c1_8, %c17] : memref<8x18x18xf32, #tpu.memory_space<vmem>>, vector<8x16x1xf32>
    tpu.vector_store %arg2[%c0_7, %c1_8, %c17], %6 {strides = array<i32>} : memref<8x18x18xf32, #tpu.memory_space<vmem>>, vector<8x16x1xf32>,
    %c0_9 = arith.constant 0 : index
    %c0_10 = arith.constant 0 : index
    %c1_11 = arith.constant 1 : index
    %8 = vector.load %arg2[%c0_9, %c0_10, %c1_11] : memref<8x18x18xf32, #tpu.memory_space<vmem>>, vector<8x1x16xf32>
    tpu.vector_store %arg2[%c0_9, %c0_10, %c1_11], %1 {strides = array<i32>} : memref<8x18x18xf32, #tpu.memory_space<vmem>>, vector<8x1x16xf32>,
    %9 = vector.extract_strided_slice %1 {offsets = [0, 0, 15], sizes = [8, 1, 1], strides = [1, 1, 1]} : vector<8x1x16xf32> to vector<8x1x1xf32>
    %c0_12 = arith.constant 0 : index
    %c0_13 = arith.constant 0 : index
    %c0_14 = arith.constant 0 : index
    %10 = vector.load %arg2[%c0_12, %c0_13, %c0_14] : memref<8x18x18xf32, #tpu.memory_space<vmem>>, vector<8x1x1xf32>
    tpu.vector_store %arg2[%c0_12, %c0_13, %c0_14], %9 {strides = array<i32>} : memref<8x18x18xf32, #tpu.memory_space<vmem>>, vector<8x1x1xf32>,
    %11 = vector.extract_strided_slice %1 {offsets = [0, 0, 0], sizes = [8, 1, 1], strides = [1, 1, 1]} : vector<8x1x16xf32> to vector<8x1x1xf32>
    %c0_15 = arith.constant 0 : index
    %c0_16 = arith.constant 0 : index
    %c17_17 = arith.constant 17 : index
    %12 = vector.load %arg2[%c0_15, %c0_16, %c17_17] : memref<8x18x18xf32, #tpu.memory_space<vmem>>, vector<8x1x1xf32>
    tpu.vector_store %arg2[%c0_15, %c0_16, %c17_17], %11 {strides = array<i32>} : memref<8x18x18xf32, #tpu.memory_space<vmem>>, vector<8x1x1xf32>,
    %c0_18 = arith.constant 0 : index
    %c17_19 = arith.constant 17 : index
    %c1_20 = arith.constant 1 : index
    %13 = vector.load %arg2[%c0_18, %c17_19, %c1_20] : memref<8x18x18xf32, #tpu.memory_space<vmem>>, vector<8x1x16xf32>
    tpu.vector_store %arg2[%c0_18, %c17_19, %c1_20], %2 {strides = array<i32>} : memref<8x18x18xf32, #tpu.memory_space<vmem>>, vector<8x1x16xf32>,
    %14 = vector.extract_strided_slice %2 {offsets = [0, 0, 15], sizes = [8, 1, 1], strides = [1, 1, 1]} : vector<8x1x16xf32> to vector<8x1x1xf32>
    %c0_21 = arith.constant 0 : index
    %c17_22 = arith.constant 17 : index
    %c0_23 = arith.constant 0 : index
    %15 = vector.load %arg2[%c0_21, %c17_22, %c0_23] : memref<8x18x18xf32, #tpu.memory_space<vmem>>, vector<8x1x1xf32>
    tpu.vector_store %arg2[%c0_21, %c17_22, %c0_23], %14 {strides = array<i32>} : memref<8x18x18xf32, #tpu.memory_space<vmem>>, vector<8x1x1xf32>,
    %16 = vector.extract_strided_slice %2 {offsets = [0, 0, 0], sizes = [8, 1, 1], strides = [1, 1, 1]} : vector<8x1x16xf32> to vector<8x1x1xf32>
    %c0_24 = arith.constant 0 : index
    %c17_25 = arith.constant 17 : index
    %c17_26 = arith.constant 17 : index
    %17 = vector.load %arg2[%c0_24, %c17_25, %c17_26] : memref<8x18x18xf32, #tpu.memory_space<vmem>>, vector<8x1x1xf32>
    tpu.vector_store %arg2[%c0_24, %c17_25, %c17_26], %16 {strides = array<i32>} : memref<8x18x18xf32, #tpu.memory_space<vmem>>, vector<8x1x1xf32>,
    return
  }
  func.func @transform_0(%arg0: i32) -> (i32, i32, i32) {
    %c0_i32 = arith.constant 0 : i32
    %c0_i32_0 = arith.constant 0 : i32
    %c0_i32_1 = arith.constant 0 : i32
    return %arg0, %c0_i32, %c0_i32_0 : i32, i32, i32
  }
  func.func @transform_1(%arg0: i32) -> (i32, i32, i32) {
    %c0_i32 = arith.constant 0 : i32
    %c0_i32_0 = arith.constant 0 : i32
    %c0_i32_1 = arith.constant 0 : i32
    return %arg0, %c0_i32, %c0_i32_0 : i32, i32, i32
  }
}

</mosaic_0001>

<llo_original>
// kernel: tpu_custom_call.1
$region0: #{tpu_custom_call.1}
  #allocation0 [shape = 'u32[]', space=smem, size = 0x4, offset = 0x4, fixed_abs, tag = 'smem constant byte address 0x4 - core index']
  #allocation1 [shape = 'u32[144,128]{1,0:T(1,128)}', space=vmem, size = 0x12000, scoped, tag = 'internal scratch']
  %s0 = inlined_call_operand.hbm [shape: f32[8,16,16], index: 0, kind: input, shape index: {}]
  %s1 = inlined_call_operand.vmem [shape: f32[8,18,18], index: 1, kind: output, shape index: {}]
  %s2 = sld [smem:[#allocation0]]
  $region18: #{tpu_custom_call.1} parent=0
    _
  %s4 = ssub.s32 1, %s2
  %s5 = scalar_select 0, %s4, %s2
  $region1: #{tpu_custom_call.1} parent=0
    #allocation2 [shape = 'u8[65536]{0}', space=vmem, size = 0x10000, scoped, tag = 'input window, operand 0, single buffered']
    #allocation3 [shape = 's32[1]{0}', space=sflag, size = 0x4, scoped, tag = 'scoped memory for tpu_custom_call.1']
    %6 = vsyncpa [#allocation3], 0
    // Predicated region
    $region2: #{tpu_custom_call.1} parent=1 // pred_check
      _
    $region3: #{tpu_custom_call.1} parent=1 // pred_check_branch
      %8 = sbr.rel (0) target = $region5
    $region4: #{tpu_custom_call.1} parent=1 // pred_region
      %s10 = ssub.s32 2048, 2048
      %11 = vsyncadd [#allocation3], %s10
      %s12 = sshll.u32 [#allocation2], 4
      %s13 = int_to_ptr.vmem [resolvable:$true] %s12
      %18 = dma.hbm_to_vmem [thread:$0]  %s0, 2048, %s13, [#allocation3], 128, 128, 8
    $region5: #{tpu_custom_call.1} parent=1 // pred_fallthru
      _
    // Predicated region
    $region6: #{tpu_custom_call.1} parent=1 // pred_check
      _
    $region7: #{tpu_custom_call.1} parent=1 // pred_check_branch
      %20 = sbr.rel (0) target = $region9
    $region8: #{tpu_custom_call.1} parent=1 // pred_region
      %21 = dma.done [#allocation3], 2048
    $region9: #{tpu_custom_call.1} parent=1 // pred_fallthru
      _
    %v22 = vld [vmem:[#allocation2] sm:$0xff]
    %v23 = vld [vmem:[#allocation2 + $0x8] sm:$0xff]
    %v24 = vld [vmem:[#allocation2 + $0x10] sm:$0xff]
    %v25 = vld [vmem:[#allocation2 + $0x18] sm:$0xff]
    %v26 = vld [vmem:[#allocation2 + $0x20] sm:$0xff]
    %v27 = vld [vmem:[#allocation2 + $0x28] sm:$0xff]
    %v28 = vld [vmem:[#allocation2 + $0x30] sm:$0xff]
    %v29 = vld [vmem:[#allocation2 + $0x38] sm:$0xff]
    %v30 = vld [vmem:[#allocation2 + $0x40] sm:$0xff]
    %v31 = vld [vmem:[#allocation2 + $0x48] sm:$0xff]
    %v32 = vld [vmem:[#allocation2 + $0x50] sm:$0xff]
    %v33 = vld [vmem:[#allocation2 + $0x58] sm:$0xff]
    %v34 = vld [vmem:[#allocation2 + $0x60] sm:$0xff]
    %v35 = vld [vmem:[#allocation2 + $0x68] sm:$0xff]
    %v36 = vld [vmem:[#allocation2 + $0x70] sm:$0xff]
    %v37 = vld [vmem:[#allocation2 + $0x78] sm:$0xff]
    %54 = vrot.lane.b32.xlu0 %v22, 1
    %v55 = vpop.permute.xlu0 %54
    %56 = vrot.lane.b32.xlu0 %v23, 1
    %v57 = vpop.permute.xlu0 %56
    %58 = vrot.lane.b32.xlu0 %v24, 1
    %v59 = vpop.permute.xlu0 %58
    %60 = vrot.lane.b32.xlu0 %v25, 1
    %v61 = vpop.permute.xlu0 %60
    %62 = vrot.lane.b32.xlu0 %v26, 1
    %v63 = vpop.permute.xlu0 %62
    %64 = vrot.lane.b32.xlu0 %v27, 1
    %v65 = vpop.permute.xlu0 %64
    %66 = vrot.lane.b32.xlu0 %v28, 1
    %v67 = vpop.permute.xlu0 %66
    %68 = vrot.lane.b32.xlu0 %v29, 1
    %v69 = vpop.permute.xlu0 %68
    %70 = vrot.lane.b32.xlu0 %v30, 1
    %v71 = vpop.permute.xlu0 %70
    %72 = vrot.lane.b32.xlu0 %v31, 1
    %v73 = vpop.permute.xlu0 %72
    %74 = vrot.lane.b32.xlu0 %v32, 1
    %v75 = vpop.permute.xlu0 %74
    %76 = vrot.lane.b32.xlu0 %v33, 1
    %v77 = vpop.permute.xlu0 %76
    %78 = vrot.lane.b32.xlu0 %v34, 1
    %v79 = vpop.permute.xlu0 %78
    %80 = vrot.lane.b32.xlu0 %v35, 1
    %v81 = vpop.permute.xlu0 %80
    %82 = vrot.lane.b32.xlu0 %v36, 1
    %v83 = vpop.permute.xlu0 %82
    %84 = vrot.lane.b32.xlu0 %v37, 1
    %v85 = vpop.permute.xlu0 %84
    %vm102 = vcmask 138248
    %103 = vst.msk [vmem:[%s1 + $0x1] sm:$0xff] %vm102, %v55
    %104 = vst.msk [vmem:[%s1 + $0x9] sm:$0xff] %vm102, %v57
    %105 = vst.msk [vmem:[%s1 + $0x19] sm:$0xff] %vm102, %v59
    %106 = vst.msk [vmem:[%s1 + $0x21] sm:$0xff] %vm102, %v61
    %107 = vst.msk [vmem:[%s1 + $0x31] sm:$0xff] %vm102, %v63
    %108 = vst.msk [vmem:[%s1 + $0x39] sm:$0xff] %vm102, %v65
    %109 = vst.msk [vmem:[%s1 + $0x49] sm:$0xff] %vm102, %v67
    %110 = vst.msk [vmem:[%s1 + $0x51] sm:$0xff] %vm102, %v69
    %111 = vst.msk [vmem:[%s1 + $0x61] sm:$0xff] %vm102, %v71
    %112 = vst.msk [vmem:[%s1 + $0x69] sm:$0xff] %vm102, %v73
    %113 = vst.msk [vmem:[%s1 + $0x79] sm:$0xff] %vm102, %v75
    %114 = vst.msk [vmem:[%s1 + $0x81] sm:$0xff] %vm102, %v77
    %115 = vst.msk [vmem:[%s1 + $0x91] sm:$0xff] %vm102, %v79
    %116 = vst.msk [vmem:[%s1 + $0x99] sm:$0xff] %vm102, %v81
    %117 = vst.msk [vmem:[%s1 + $0xa9] sm:$0xff] %vm102, %v83
    %118 = vst.msk [vmem:[%s1 + $0xb1] sm:$0xff] %vm102, %v85
    %119 = vrot.lane.b32.xlu0 %v22, 113
    %v120 = vpop.permute.xlu0 %119
    %121 = vrot.lane.b32.xlu0 %v23, 113
    %v122 = vpop.permute.xlu0 %121
    %123 = vrot.lane.b32.xlu0 %v24, 113
    %v124 = vpop.permute.xlu0 %123
    %125 = vrot.lane.b32.xlu0 %v25, 113
    %v126 = vpop.permute.xlu0 %125
    %127 = vrot.lane.b32.xlu0 %v26, 113
    %v128 = vpop.permute.xlu0 %127
    %129 = vrot.lane.b32.xlu0 %v27, 113
    %v130 = vpop.permute.xlu0 %129
    %131 = vrot.lane.b32.xlu0 %v28, 113
    %v132 = vpop.permute.xlu0 %131
    %133 = vrot.lane.b32.xlu0 %v29, 113
    %v134 = vpop.permute.xlu0 %133
    %135 = vrot.lane.b32.xlu0 %v30, 113
    %v136 = vpop.permute.xlu0 %135
    %137 = vrot.lane.b32.xlu0 %v31, 113
    %v138 = vpop.permute.xlu0 %137
    %139 = vrot.lane.b32.xlu0 %v32, 113
    %v140 = vpop.permute.xlu0 %139
    %141 = vrot.lane.b32.xlu0 %v33, 113
    %v142 = vpop.permute.xlu0 %141
    %143 = vrot.lane.b32.xlu0 %v34, 113
    %v144 = vpop.permute.xlu0 %143
    %145 = vrot.lane.b32.xlu0 %v35, 113
    %v146 = vpop.permute.xlu0 %145
    %147 = vrot.lane.b32.xlu0 %v36, 113
    %v148 = vpop.permute.xlu0 %147
    %149 = vrot.lane.b32.xlu0 %v37, 113
    %v150 = vpop.permute.xlu0 %149
    %vm167 = vcmask 7168
    %168 = vst.msk [vmem:[%s1 + $0x1] sm:$0xff] %vm167, %v120
    %169 = vst.msk [vmem:[%s1 + $0x9] sm:$0xff] %vm167, %v122
    %170 = vst.msk [vmem:[%s1 + $0x19] sm:$0xff] %vm167, %v124
    %171 = vst.msk [vmem:[%s1 + $0x21] sm:$0xff] %vm167, %v126
    %172 = vst.msk [vmem:[%s1 + $0x31] sm:$0xff] %vm167, %v128
    %173 = vst.msk [vmem:[%s1 + $0x39] sm:$0xff] %vm167, %v130
    %174 = vst.msk [vmem:[%s1 + $0x49] sm:$0xff] %vm167, %v132
    %175 = vst.msk [vmem:[%s1 + $0x51] sm:$0xff] %vm167, %v134
    %176 = vst.msk [vmem:[%s1 + $0x61] sm:$0xff] %vm167, %v136
    %177 = vst.msk [vmem:[%s1 + $0x69] sm:$0xff] %vm167, %v138
    %178 = vst.msk [vmem:[%s1 + $0x79] sm:$0xff] %vm167, %v140
    %179 = vst.msk [vmem:[%s1 + $0x81] sm:$0xff] %vm167, %v142
    %180 = vst.msk [vmem:[%s1 + $0x91] sm:$0xff] %vm167, %v144
    %181 = vst.msk [vmem:[%s1 + $0x99] sm:$0xff] %vm167, %v146
    %182 = vst.msk [vmem:[%s1 + $0xa9] sm:$0xff] %vm167, %v148
    %183 = vst.msk [vmem:[%s1 + $0xb1] sm:$0xff] %vm167, %v150
    %184 = vrot.lane.b32.xlu0 %v22, 17
    %v185 = vpop.permute.xlu0 %184
    %186 = vrot.lane.b32.xlu0 %v23, 17
    %v187 = vpop.permute.xlu0 %186
    %188 = vrot.lane.b32.xlu0 %v24, 17
    %v189 = vpop.permute.xlu0 %188
    %190 = vrot.lane.b32.xlu0 %v25, 17
    %v191 = vpop.permute.xlu0 %190
    %192 = vrot.lane.b32.xlu0 %v26, 17
    %v193 = vpop.permute.xlu0 %192
    %194 = vrot.lane.b32.xlu0 %v27, 17
    %v195 = vpop.permute.xlu0 %194
    %196 = vrot.lane.b32.xlu0 %v28, 17
    %v197 = vpop.permute.xlu0 %196
    %198 = vrot.lane.b32.xlu0 %v29, 17
    %v199 = vpop.permute.xlu0 %198
    %200 = vrot.lane.b32.xlu0 %v30, 17
    %v201 = vpop.permute.xlu0 %200
    %202 = vrot.lane.b32.xlu0 %v31, 17
    %v203 = vpop.permute.xlu0 %202
    %204 = vrot.lane.b32.xlu0 %v32, 17
    %v205 = vpop.permute.xlu0 %204
    %206 = vrot.lane.b32.xlu0 %v33, 17
    %v207 = vpop.permute.xlu0 %206
    %208 = vrot.lane.b32.xlu0 %v34, 17
    %v209 = vpop.permute.xlu0 %208
    %210 = vrot.lane.b32.xlu0 %v35, 17
    %v211 = vpop.permute.xlu0 %210
    %212 = vrot.lane.b32.xlu0 %v36, 17
    %v213 = vpop.permute.xlu0 %212
    %214 = vrot.lane.b32.xlu0 %v37, 17
    %v215 = vpop.permute.xlu0 %214
    %vm232 = vcmask 146568
    %233 = vst.msk [vmem:[%s1 + $0x1] sm:$0xff] %vm232, %v185
    %234 = vst.msk [vmem:[%s1 + $0x9] sm:$0xff] %vm232, %v187
    %235 = vst.msk [vmem:[%s1 + $0x19] sm:$0xff] %vm232, %v189
    %236 = vst.msk [vmem:[%s1 + $0x21] sm:$0xff] %vm232, %v191
    %237 = vst.msk [vmem:[%s1 + $0x31] sm:$0xff] %vm232, %v193
    %238 = vst.msk [vmem:[%s1 + $0x39] sm:$0xff] %vm232, %v195
    %239 = vst.msk [vmem:[%s1 + $0x49] sm:$0xff] %vm232, %v197
    %240 = vst.msk [vmem:[%s1 + $0x51] sm:$0xff] %vm232, %v199
    %241 = vst.msk [vmem:[%s1 + $0x61] sm:$0xff] %vm232, %v201
    %242 = vst.msk [vmem:[%s1 + $0x69] sm:$0xff] %vm232, %v203
    %243 = vst.msk [vmem:[%s1 + $0x79] sm:$0xff] %vm232, %v205
    %244 = vst.msk [vmem:[%s1 + $0x81] sm:$0xff] %vm232, %v207
    %245 = vst.msk [vmem:[%s1 + $0x91] sm:$0xff] %vm232, %v209
    %246 = vst.msk [vmem:[%s1 + $0x99] sm:$0xff] %vm232, %v211
    %247 = vst.msk [vmem:[%s1 + $0xa9] sm:$0xff] %vm232, %v213
    %248 = vst.msk [vmem:[%s1 + $0xb1] sm:$0xff] %vm232, %v215
    %vm249 = vcmask 138255
    %250 = vst.msk [vmem:[%s1 - $0x7] sm:$0x80] %vm249, %v57
    %251 = vst.msk [vmem:[%s1 + $0x11] sm:$0x80] %vm249, %v61
    %252 = vst.msk [vmem:[%s1 + $0x29] sm:$0x80] %vm249, %v65
    %253 = vst.msk [vmem:[%s1 + $0x41] sm:$0x80] %vm249, %v69
    %254 = vst.msk [vmem:[%s1 + $0x59] sm:$0x80] %vm249, %v73
    %255 = vst.msk [vmem:[%s1 + $0x71] sm:$0x80] %vm249, %v77
    %256 = vst.msk [vmem:[%s1 + $0x89] sm:$0x80] %vm249, %v81
    %257 = vst.msk [vmem:[%s1 + $0xa1] sm:$0x80] %vm249, %v85
    %vm258 = vcmask 7175
    %259 = vst.msk [vmem:[%s1 - $0x7] sm:$0x80] %vm258, %v122
    %260 = vst.msk [vmem:[%s1 + $0x11] sm:$0x80] %vm258, %v126
    %261 = vst.msk [vmem:[%s1 + $0x29] sm:$0x80] %vm258, %v130
    %262 = vst.msk [vmem:[%s1 + $0x41] sm:$0x80] %vm258, %v134
    %263 = vst.msk [vmem:[%s1 + $0x59] sm:$0x80] %vm258, %v138
    %264 = vst.msk [vmem:[%s1 + $0x71] sm:$0x80] %vm258, %v142
    %265 = vst.msk [vmem:[%s1 + $0x89] sm:$0x80] %vm258, %v146
    %266 = vst.msk [vmem:[%s1 + $0xa1] sm:$0x80] %vm258, %v150
    %vm267 = vcmask 146575
    %268 = vst.msk [vmem:[%s1 - $0x7] sm:$0x80] %vm267, %v187
    %269 = vst.msk [vmem:[%s1 + $0x11] sm:$0x80] %vm267, %v191
    %270 = vst.msk [vmem:[%s1 + $0x29] sm:$0x80] %vm267, %v195
    %271 = vst.msk [vmem:[%s1 + $0x41] sm:$0x80] %vm267, %v199
    %272 = vst.msk [vmem:[%s1 + $0x59] sm:$0x80] %vm267, %v203
    %273 = vst.msk [vmem:[%s1 + $0x71] sm:$0x80] %vm267, %v207
    %274 = vst.msk [vmem:[%s1 + $0x89] sm:$0x80] %vm267, %v211
    %275 = vst.msk [vmem:[%s1 + $0xa1] sm:$0x80] %vm267, %v215
    %vm276 = vcmask 131080
    %277 = vst.msk [vmem:[%s1 + $0x11] sm:$0x1] %vm276, %v55
    %278 = vst.msk [vmem:[%s1 + $0x29] sm:$0x1] %vm276, %v59
    %279 = vst.msk [vmem:[%s1 + $0x41] sm:$0x1] %vm276, %v63
    %280 = vst.msk [vmem:[%s1 + $0x59] sm:$0x1] %vm276, %v67
    %281 = vst.msk [vmem:[%s1 + $0x71] sm:$0x1] %vm276, %v71
    %282 = vst.msk [vmem:[%s1 + $0x89] sm:$0x1] %vm276, %v75
    %283 = vst.msk [vmem:[%s1 + $0xa1] sm:$0x1] %vm276, %v79
    %284 = vst.msk [vmem:[%s1 + $0xb9] sm:$0x1] %vm276, %v83
    %vm285 = vcmask 0
    %286 = vst.msk [vmem:[%s1 + $0x11] sm:$0x1] %vm285, %v120
    %287 = vst.msk [vmem:[%s1 + $0x29] sm:$0x1] %vm285, %v124
    %288 = vst.msk [vmem:[%s1 + $0x41] sm:$0x1] %vm285, %v128
    %289 = vst.msk [vmem:[%s1 + $0x59] sm:$0x1] %vm285, %v132
    %290 = vst.msk [vmem:[%s1 + $0x71] sm:$0x1] %vm285, %v136
    %291 = vst.msk [vmem:[%s1 + $0x89] sm:$0x1] %vm285, %v140
    %292 = vst.msk [vmem:[%s1 + $0xa1] sm:$0x1] %vm285, %v144
    %293 = vst.msk [vmem:[%s1 + $0xb9] sm:$0x1] %vm285, %v148
    %vm294 = vcmask 139400
    %295 = vst.msk [vmem:[%s1 + $0x11] sm:$0x1] %vm294, %v185
    %296 = vst.msk [vmem:[%s1 + $0x29] sm:$0x1] %vm294, %v189
    %297 = vst.msk [vmem:[%s1 + $0x41] sm:$0x1] %vm294, %v193
    %298 = vst.msk [vmem:[%s1 + $0x59] sm:$0x1] %vm294, %v197
    %299 = vst.msk [vmem:[%s1 + $0x71] sm:$0x1] %vm294, %v201
    %300 = vst.msk [vmem:[%s1 + $0x89] sm:$0x1] %vm294, %v205
    %301 = vst.msk [vmem:[%s1 + $0xa1] sm:$0x1] %vm294, %v209
    %302 = vst.msk [vmem:[%s1 + $0xb9] sm:$0x1] %vm294, %v213
    // Predicated region
    $region10: #{tpu_custom_call.1} parent=1 // pred_check
      _
    $region11: #{tpu_custom_call.1} parent=1 // pred_check_branch
      %304 = sbr.rel (0) target = $region13
    $region12: #{tpu_custom_call.1} parent=1 // pred_region
      _
    $region13: #{tpu_custom_call.1} parent=1 // pred_fallthru
      _
    // Predicated region
    $region14: #{tpu_custom_call.1} parent=1 // pred_check
      _
    $region15: #{tpu_custom_call.1} parent=1 // pred_check_branch
      %306 = sbr.rel (0) target = $region17
    $region16: #{tpu_custom_call.1} parent=1 // pred_region
      _
    $region17: #{tpu_custom_call.1} parent=1 // pred_fallthru
      _
    %307 = vsyncpa [#allocation3], 1

</llo_original>
